<compile_context>
chip_gen: v5e
topology: v5e:2x2
jax: 0.10.0
libtpu: 0.0.40
codegen_flags: <defaults>
</compile_context>

<pallas_src>
import functools
import math

import jax
import jax.numpy as jnp
import numpy as np
from jax.experimental import pallas as pl
from jax.experimental.pallas import tpu as pltpu

EPS = 1e-5
LANE = 128


def _round_up(v, m):
    return ((v + m - 1) // m) * m


def _block_stats(t2d):
    """Per-block channel statistics: (1, 2, C) = [block mean, centered M2]."""
    m = jnp.mean(t2d, axis=0, keepdims=True)
    d = t2d - m
    m2 = jnp.sum(d * d, axis=0, keepdims=True)
    return jnp.concatenate([m, m2], axis=0)[None]


def _pooled_stats(st, n_per_block, n_total):
    """Exact pooled (Chan) combination of per-block (mean, M2) partial statistics.

    st: (nblocks, 2, C) with equal per-block counts.  Returns biased (mean, var),
    each (1, C).  Numerically robust (no E[x^2]-E[x]^2 cancellation).
    """
    means = st[:, 0, :]
    m2s = st[:, 1, :]
    mean = jnp.mean(means, axis=0, keepdims=True)
    m2 = (jnp.sum(m2s, axis=0, keepdims=True)
          + n_per_block * jnp.sum((means - mean) ** 2, axis=0, keepdims=True))
    return mean, m2 * (1.0 / n_total)


# --------------------------------------------------------------------------- #
# Pass 1: per-batch-block channel statistics of x (for BN1)
# --------------------------------------------------------------------------- #
def _x_stats_kernel(x_ref, st_ref, *, HW, C):
    st_ref[...] = _block_stats(x_ref[...].reshape(HW, C))


# --------------------------------------------------------------------------- #
# Pass 2: BN1 -> conv3x3 -> PReLU -> conv3x3(stride) -> shortcut (raw) + stats
# --------------------------------------------------------------------------- #
def _main_kernel(*refs, B, H, W, Cp, Dp, s, Ho, Wo, conv_shortcut):
    if conv_shortcut:
        (s1_ref, x_ref, g1_ref, b1_ref, w1_ref, a_ref, w2_ref, ws_ref,
         r_ref, sc_ref, rst_ref, scst_ref, pad1_ref, pady_ref) = refs
    else:
        (s1_ref, x_ref, g1_ref, b1_ref, w1_ref, a_ref, w2_ref,
         r_ref, sc_ref, rst_ref, pad1_ref, pady_ref) = refs

    f32, bf16 = jnp.float32, jnp.bfloat16
    HW = H * W
    no_b = Ho * Wo

    def win(k0, size):
        # strided output-position window; plain slice when stride == 1
        return pl.ds(k0, size, s) if s > 1 else pl.ds(k0, size)

    def fill_halo(pad_ref, C):
        # zero only the 1-pixel halo; the interior is overwritten right after
        dt = pad_ref.dtype
        zrow = jnp.zeros((1, 1, W + 2, C), dt)
        pad_ref[:, 0:1, :, :] = zrow
        pad_ref[:, H + 1:H + 2, :, :] = zrow
        zcol = jnp.zeros((1, H + 2, 1, C), dt)
        pad_ref[:, :, 0:1, :] = zcol
        pad_ref[:, :, W + 1:W + 2, :] = zcol

    # ---- BN1: pooled global batch statistics, then normalize this block ----
    mean1, var1 = _pooled_stats(s1_ref[...], float(HW), float(B * HW))
    xb = x_ref[...].reshape(HW, Cp)
    xn = g1_ref[...] * (xb - mean1) * jax.lax.rsqrt(var1 + EPS) + b1_ref[...]

    # ---- Conv2d(Cin, D, 3x3, stride 1, pad 1): 9 per-tap MXU matmuls (bf16 / f32 acc)
    fill_halo(pad1_ref, Cp)
    pad1_ref[:, 1:H + 1, 1:W + 1, :] = xn.reshape(1, H, W, Cp)
    acc1 = None
    for ky in range(3):
        for kx in range(3):
            a_sl = pad1_ref[:, ky:ky + H, kx:kx + W, :].reshape(HW, Cp).astype(bf16)
            p = jnp.dot(a_sl, w1_ref[3 * ky + kx], preferred_element_type=f32)
            acc1 = p if acc1 is None else acc1 + p

    # ---- PReLU(depth), per-channel slope ----
    y = jnp.where(acc1 > 0, acc1, acc1 * a_ref[...])

    # ---- Conv2d(D, D, 3x3, stride s, pad 1): per-tap matmuls only at strided
    #      output positions (stride applied in-kernel) ----
    fill_halo(pady_ref, Dp)
    pady_ref[:, 1:H + 1, 1:W + 1, :] = y.reshape(1, H, W, Dp)
    acc2 = None
    for ky in range(3):
        for kx in range(3):
            y_sl = pady_ref[:, win(ky, Ho), win(kx, Wo), :].reshape(no_b, Dp).astype(bf16)
            p = jnp.dot(y_sl, w2_ref[3 * ky + kx], preferred_element_type=f32)
            acc2 = p if acc2 is None else acc2 + p

    r_ref[...] = acc2.reshape(1, no_b, Dp)        # raw residual (pre-BN2)
    rst_ref[...] = _block_stats(acc2)             # partial stats for BN2

    # ---- shortcut at strided positions, straight from the VMEM-resident x block ----
    xs = x_ref[:, win(0, Ho), win(0, Wo), :].reshape(no_b, Cp)
    if conv_shortcut:
        sc = jnp.dot(xs.astype(bf16), ws_ref[...], preferred_element_type=f32)
        sc_ref[...] = sc.reshape(1, no_b, Dp)
        scst_ref[...] = _block_stats(sc)          # partial stats for shortcut BN
    else:
        sc_ref[...] = xs.reshape(1, no_b, Dp)     # MaxPool2d(1, s) == strided subsample


# --------------------------------------------------------------------------- #
# Pass 3: BN2 / shortcut-BN normalize (pooled batch stats) + residual add
# --------------------------------------------------------------------------- #
def _finalize_kernel(*refs, no_b, Dp, n_total, conv_shortcut):
    if conv_shortcut:
        (rst_ref, g2_ref, b2_ref, scst_ref, gs_ref, bs_ref,
         r_ref, sc_ref, out_ref) = refs
    else:
        (rst_ref, g2_ref, b2_ref, r_ref, sc_ref, out_ref) = refs

    m2, v2 = _pooled_stats(rst_ref[...], float(no_b), float(n_total))
    r = r_ref[...].reshape(no_b, Dp)
    res = g2_ref[...] * (r - m2) * jax.lax.rsqrt(v2 + EPS) + b2_ref[...]

    sc = sc_ref[...].reshape(no_b, Dp)
    if conv_shortcut:
        ms, vs = _pooled_stats(scst_ref[...], float(no_b), float(n_total))
        sc = gs_ref[...] * (sc - ms) * jax.lax.rsqrt(vs + EPS) + bs_ref[...]

    out_ref[...] = (res + sc).reshape(1, no_b, Dp)


# --------------------------------------------------------------------------- #
# Wrapper helpers
# --------------------------------------------------------------------------- #
def _full_spec(shape):
    nd = len(shape)
    return pl.BlockSpec(shape, lambda *_, nd=nd: (0,) * nd)


def _vmem_limit(block_arrays, scratch_bytes=0, temp_bytes=0):
    """Scoped-VMEM request from actual per-step residency.

    Counts the pipeline's 2x double-buffering of every (blocked or full) operand,
    plus scratch and an estimate for value temporaries, then caps at ~80% of this
    generation's physical VMEM (64 MiB fallback keeps v7x safe).
    """
    buf = sum(2 * math.prod(sh) * np.dtype(dt).itemsize for sh, dt in block_arrays)
    need = buf + scratch_bytes + temp_bytes + (2 << 20)
    try:
        cap = int(getattr(pltpu.get_tpu_info(), "vmem_capacity_bytes", 64 << 20))
    except Exception:
        cap = 64 << 20
    return int(min(max(need, 16 << 20), int(cap * 0.8)))


# --------------------------------------------------------------------------- #
# Wrapper (NCHW in / NCHW out, like the PyTorch module)
# --------------------------------------------------------------------------- #
def bottleneck_ir_forward(x_nchw, params, stride):
    B, Cin, H, W = x_nchw.shape
    D = params["w1"].shape[-1]
    conv_shortcut = (Cin != D)        # torch: in_channel == depth -> MaxPool shortcut
    s = int(stride)
    Ho = (H - 1) // s + 1
    Wo = (W - 1) // s + 1
    no_b = Ho * Wo

    f32, bf16 = jnp.float32, jnp.bfloat16
    Cp = _round_up(Cin, LANE)
    Dp = _round_up(D, LANE)
    if not conv_shortcut:
        assert Cp == Dp

    # NHWC, channels zero-padded to a lane multiple -> lane-dense stores and
    # MXU-aligned (K, N multiples of 128) matmuls throughout the kernels.
    x = jnp.transpose(x_nchw, (0, 2, 3, 1)).astype(f32)
    x = jnp.pad(x, ((0, 0), (0, 0), (0, 0), (0, Cp - Cin)))

    def vec(p, n):
        return jnp.pad(p.astype(f32), (0, n - p.shape[0])).reshape(1, n)

    g1, b1 = vec(params["g1"], Cp), vec(params["b1"], Cp)
    a = vec(params["a"], Dp)
    g2, b2 = vec(params["g2"], Dp), vec(params["b2"], Dp)
    w1 = jnp.pad(params["w1"], ((0, 0), (0, Cp - Cin), (0, Dp - D))).astype(bf16)
    w2 = jnp.pad(params["w2"], ((0, 0), (0, Dp - D), (0, Dp - D))).astype(bf16)
    if conv_shortcut:
        ws = jnp.pad(params["ws"], ((0, Cp - Cin), (0, Dp - D))).astype(bf16)
        gs, bs = vec(params["gs"], Dp), vec(params["bs"], Dp)

    x_block = ((1, H, W, Cp), f32)

    # ---- Pass 1: BN1 partial statistics (tiled over batch, megacore-parallel) ----
    stats1 = pl.pallas_call(
        functools.partial(_x_stats_kernel, HW=H * W, C=Cp),
        grid=(B,),
        in_specs=[pl.BlockSpec((1, H, W, Cp), lambda b: (b, 0, 0, 0))],
        out_specs=pl.BlockSpec((1, 2, Cp), lambda b: (b, 0, 0)),
        out_shape=jax.ShapeDtypeStruct((B, 2, Cp), f32),
        compiler_params=pltpu.CompilerParams(
            dimension_semantics=("parallel",),
            vmem_limit_bytes=_vmem_limit([x_block, ((1, 2, Cp), f32)],
                                         temp_bytes=2 * H * W * Cp * 4)),
    )(x)

    # ---- Pass 2: main fused sweep (tiled over batch, megacore-parallel) ----
    inputs = [stats1, x, g1, b1, w1, a, w2]
    in_specs = [_full_spec((B, 2, Cp)),
                pl.BlockSpec((1, H, W, Cp), lambda b: (b, 0, 0, 0)),
                _full_spec((1, Cp)), _full_spec((1, Cp)),
                _full_spec((9, Cp, Dp)), _full_spec((1, Dp)), _full_spec((9, Dp, Dp))]
    if conv_shortcut:
        inputs.append(ws)
        in_specs.append(_full_spec((Cp, Dp)))

    out_shapes = [jax.ShapeDtypeStruct((B, no_b, Dp), f32),   # raw residual (pre-BN2)
                  jax.ShapeDtypeStruct((B, no_b, Dp), f32),   # raw shortcut
                  jax.ShapeDtypeStruct((B, 2, Dp), f32)]      # residual partial stats
    out_specs = [pl.BlockSpec((1, no_b, Dp), lambda b: (b, 0, 0)),
                 pl.BlockSpec((1, no_b, Dp), lambda b: (b, 0, 0)),
                 pl.BlockSpec((1, 2, Dp), lambda b: (b, 0, 0))]
    if conv_shortcut:
        out_shapes.append(jax.ShapeDtypeStruct((B, 2, Dp), f32))   # shortcut stats
        out_specs.append(pl.BlockSpec((1, 2, Dp), lambda b: (b, 0, 0)))

    scratch = [pltpu.VMEM((1, H + 2, W + 2, Cp), f32),    # halo buffer for BN1(x)
               pltpu.VMEM((1, H + 2, W + 2, Dp), f32)]    # halo buffer for PReLU out
    scratch_bytes = (H + 2) * (W + 2) * (Cp + Dp) * 4

    blocks_b = ([((B, 2, Cp), f32), x_block, ((1, Cp), f32), ((1, Cp), f32),
                 ((9, Cp, Dp), bf16), ((1, Dp), f32), ((9, Dp, Dp), bf16)]
                + ([((Cp, Dp), bf16)] if conv_shortcut else [])
                + [((1, no_b, Dp), f32)] * 2
                + [((1, 2, Dp), f32)] * (2 if conv_shortcut else 1))

    main = pl.pallas_call(
        functools.partial(_main_kernel, B=B, H=H, W=W, Cp=Cp, Dp=Dp, s=s,
                          Ho=Ho, Wo=Wo, conv_shortcut=conv_shortcut),
        grid=(B,),
        in_specs=in_specs,
        out_specs=tuple(out_specs),
        out_shape=tuple(out_shapes),
        scratch_shapes=scratch,
        compiler_params=pltpu.CompilerParams(
            dimension_semantics=("parallel",),
            vmem_limit_bytes=_vmem_limit(blocks_b, scratch_bytes,
                                         temp_bytes=6 * H * W * max(Cp, Dp) * 4)),
    )(*inputs)
    if conv_shortcut:
        r_raw, sc_raw, rstats, scstats = main
    else:
        r_raw, sc_raw, rstats = main

    # ---- Pass 3: normalize with pooled stats and add (tiled, megacore-parallel) ----
    inputs_c = [rstats, g2, b2]
    in_specs_c = [_full_spec((B, 2, Dp)), _full_spec((1, Dp)), _full_spec((1, Dp))]
    if conv_shortcut:
        inputs_c += [scstats, gs, bs]
        in_specs_c += [_full_spec((B, 2, Dp)), _full_spec((1, Dp)), _full_spec((1, Dp))]
    inputs_c += [r_raw, sc_raw]
    in_specs_c += [pl.BlockSpec((1, no_b, Dp), lambda b: (b, 0, 0)),
                   pl.BlockSpec((1, no_b, Dp), lambda b: (b, 0, 0))]

    blocks_c = ([((B, 2, Dp), f32)] * (2 if conv_shortcut else 1)
                + [((1, Dp), f32)] * (4 if conv_shortcut else 2)
                + [((1, no_b, Dp), f32)] * 3)

    out_full = pl.pallas_call(
        functools.partial(_finalize_kernel, no_b=no_b, Dp=Dp,
                          n_total=B * no_b, conv_shortcut=conv_shortcut),
        grid=(B,),
        in_specs=in_specs_c,
        out_specs=pl.BlockSpec((1, no_b, Dp), lambda b: (b, 0, 0)),
        out_shape=jax.ShapeDtypeStruct((B, no_b, Dp), f32),
        compiler_params=pltpu.CompilerParams(
            dimension_semantics=("parallel",),
            vmem_limit_bytes=_vmem_limit(blocks_c, temp_bytes=4 * no_b * Dp * 4)),
    )(*inputs_c)

    out = out_full[:, :, :D].reshape(B, Ho, Wo, D)
    return jnp.transpose(out, (0, 3, 1, 2))                    # back to NCHW


# --------------------------------------------------------------------------- #
# Pure-JAX reference (bf16 conv operands / f32 accumulation, matching the kernel)
# --------------------------------------------------------------------------- #
def _ref_forward(x_nchw, params, stride):
    B, Cin, H, W = x_nchw.shape
    D = params["w1"].shape[-1]
    conv_shortcut = (Cin != D)
    x = jnp.transpose(x_nchw, (0, 2, 3, 1)).astype(jnp.float32)
    dn = ("NHWC", "HWIO", "NHWC")
    bf16 = jnp.bfloat16

    def bn(t, g, b):
        m = jnp.mean(t, axis=(0, 1, 2), keepdims=True)
        v = jnp.mean((t - m) ** 2, axis=(0, 1, 2), keepdims=True)
        return g * (t - m) / jnp.sqrt(v + EPS) + b

    def conv(t, w, strides, pad):
        return jax.lax.conv_general_dilated(
            t.astype(bf16), w.astype(bf16), strides, pad,
            dimension_numbers=dn, preferred_element_type=jnp.float32)

    xn = bn(x, params["g1"], params["b1"])
    y = conv(xn, params["w1"].reshape(3, 3, Cin, D), (1, 1), ((1, 1), (1, 1)))
    y = jnp.where(y > 0, y, y * params["a"])
    r = conv(y, params["w2"].reshape(3, 3, D, D), (stride, stride), ((1, 1), (1, 1)))
    r = bn(r, params["g2"], params["b2"])
    if conv_shortcut:
        sc = conv(x, params["ws"].reshape(1, 1, Cin, D), (stride, stride), ((0, 0), (0, 0)))
        sc = bn(sc, params["gs"], params["bs"])
    else:
        sc = x[:, ::stride, ::stride, :]
    return jnp.transpose(r + sc, (0, 3, 1, 2))


def _make_params(key, Cin, D, conv_shortcut):
    ks = jax.random.split(key, 9)
    p = {
        "g1": 1.0 + 0.1 * jax.random.normal(ks[0], (Cin,), jnp.float32),
        "b1": 0.1 * jax.random.normal(ks[1], (Cin,), jnp.float32),
        "w1": 0.1 * jax.random.normal(ks[2], (9, Cin, D), jnp.float32),
        "a": jnp.full((D,), 0.25, jnp.float32),            # PReLU default init
        "w2": 0.1 * jax.random.normal(ks[3], (9, D, D), jnp.float32),
        "g2": 1.0 + 0.1 * jax.random.normal(ks[4], (D,), jnp.float32),
        "b2": 0.1 * jax.random.normal(ks[5], (D,), jnp.float32),
    }
    if conv_shortcut:
        p["ws"] = 0.1 * jax.random.normal(ks[6], (Cin, D), jnp.float32)
        p["gs"] = 1.0 + 0.1 * jax.random.normal(ks[7], (D,), jnp.float32)
        p["bs"] = 0.1 * jax.random.normal(ks[8], (D,), jnp.float32)
    return p


if __name__ == "__main__":
    key = jax.random.PRNGKey(0)
    kx1, kp1, kx2, kp2 = jax.random.split(key, 4)

    # Config 1: in_channel=4 != depth=8, stride=2  ->  Conv1x1 + BN shortcut
    B, Cin, H, W, D, stride = 2, 4, 16, 16, 8, 2
    x1 = jax.random.normal(kx1, (B, Cin, H, W), jnp.float32)
    p1 = _make_params(kp1, Cin, D, conv_shortcut=True)
    out1 = jax.block_until_ready(bottleneck_ir_forward(x1, p1, stride))
    ref1 = _ref_forward(x1, p1, stride)
    assert out1.shape == (B, D, (H - 1) // stride + 1, (W - 1) // stride + 1)
    assert jnp.allclose(out1, ref1, rtol=1e-2, atol=1e-2), float(jnp.max(jnp.abs(out1 - ref1)))

    # Config 2: in_channel == depth == 4, stride=2  ->  MaxPool2d(1, stride) shortcut
    D2, stride2 = 4, 2
    x2 = jax.random.normal(kx2, (B, Cin, H, W), jnp.float32)
    p2 = _make_params(kp2, Cin, D2, conv_shortcut=False)
    out2 = jax.block_until_ready(bottleneck_ir_forward(x2, p2, stride2))
    ref2 = _ref_forward(x2, p2, stride2)
    assert out2.shape == (B, D2, (H - 1) // stride2 + 1, (W - 1) // stride2 + 1)
    assert jnp.allclose(out2, ref2, rtol=1e-2, atol=1e-2), float(jnp.max(jnp.abs(out2 - ref2)))

    print("KERNEL_OK")
</pallas_src>

<mosaic_0001>
module attributes {stable_mosaic.version = 11 : i64} {
  func.func @_x_stats_kernel(%arg0: i32, %arg1: memref<1x16x16x128xf32, #tpu.memory_space<vmem>>, %arg2: memref<1x2x128xf32, #tpu.memory_space<vmem>>) attributes {dimension_semantics = [#tpu.dimension_semantics<parallel>], iteration_bounds = array<i64: 2>, scalar_prefetch = 0 : i64, scratch_operands = 0 : i64, tpu.core_type = #tpu.core_type<tc>, window_params = [{transform_indices = @transform_0, window_bounds = array<i64: 1, 16, 16, 128>}, {transform_indices = @transform_1, window_bounds = array<i64: 1, 2, 128>}]} {
    %c0 = arith.constant 0 : index
    %c0_0 = arith.constant 0 : index
    %c0_1 = arith.constant 0 : index
    %c0_2 = arith.constant 0 : index
    %0 = vector.load %arg1[%c0, %c0_0, %c0_1, %c0_2] : memref<1x16x16x128xf32, #tpu.memory_space<vmem>>, vector<1x16x16x128xf32>
    %1 = vector.shape_cast %0 : vector<1x16x16x128xf32> to vector<256x128xf32>
    %cst = arith.constant dense<0.000000e+00> : vector<128xf32>
    %2 = vector.multi_reduction <add>, %1, %cst [0] : vector<256x128xf32> to vector<128xf32>
    %3 = vector.shape_cast %2 : vector<128xf32> to vector<1x128xf32>
    %cst_3 = arith.constant 2.560000e+02 : f32
    %4 = vector.broadcast %cst_3 : f32 to vector<1x128xf32>
    %5 = arith.divf %3, %4 : vector<1x128xf32>
    %6 = vector.broadcast %5 : vector<1x128xf32> to vector<256x128xf32>
    %7 = arith.subf %1, %6 : vector<256x128xf32>
    %8 = arith.mulf %7, %7 : vector<256x128xf32>
    %cst_4 = arith.constant dense<0.000000e+00> : vector<128xf32>
    %9 = vector.multi_reduction <add>, %8, %cst_4 [0] : vector<256x128xf32> to vector<128xf32>
    %10 = vector.shape_cast %9 : vector<128xf32> to vector<1x128xf32>
    %11 = tpu.concatenate %5, %10 in 0 : vector<1x128xf32>, vector<1x128xf32> -> vector<2x128xf32>
    %12 = vector.shape_cast %11 : vector<2x128xf32> to vector<1x2x128xf32>
    %c0_5 = arith.constant 0 : index
    %c0_6 = arith.constant 0 : index
    %c0_7 = arith.constant 0 : index
    %13 = vector.load %arg2[%c0_5, %c0_6, %c0_7] : memref<1x2x128xf32, #tpu.memory_space<vmem>>, vector<1x2x128xf32>
    tpu.vector_store %arg2[%c0_5, %c0_6, %c0_7], %12 {strides = array<i32>} : memref<1x2x128xf32, #tpu.memory_space<vmem>>, vector<1x2x128xf32>,
    return
  }
  func.func @transform_0(%arg0: i32) -> (i32, i32, i32, i32) {
    %c0_i32 = arith.constant 0 : i32
    %c0_i32_0 = arith.constant 0 : i32
    %c0_i32_1 = arith.constant 0 : i32
    %c0_i32_2 = arith.constant 0 : i32
    return %arg0, %c0_i32, %c0_i32_0, %c0_i32_1 : i32, i32, i32, i32
  }
  func.func @transform_1(%arg0: i32) -> (i32, i32, i32) {
    %c0_i32 = arith.constant 0 : i32
    %c0_i32_0 = arith.constant 0 : i32
    %c0_i32_1 = arith.constant 0 : i32
    return %arg0, %c0_i32, %c0_i32_0 : i32, i32, i32
  }
}

</mosaic_0001>

<llo_original>
// kernel: tpu_custom_call.1
$region0: #{tpu_custom_call.1}
  #allocation0 [shape = 'u32[]', space=smem, size = 0x4, offset = 0x4, fixed_abs, tag = 'smem constant byte address 0x4 - core index']
  #allocation1 [shape = 'u32[72,128]{1,0:T(1,128)}', space=vmem, size = 0x9000, scoped, tag = 'internal scratch']
  %s0 = inlined_call_operand.hbm [shape: f32[2,16,16,128], index: 0, kind: input, shape index: {}]
  %s1 = inlined_call_operand.hbm [shape: f32[2,2,128], index: 1, kind: output, shape index: {}]
  %s2 = sld [smem:[#allocation0]]
  $region41: #{tpu_custom_call.1} parent=0
    _
  %s4 = ssub.s32 1, %s2
  %s5 = scalar_select 0, %s4, %s2
  $region1: #{tpu_custom_call.1} parent=0
    #allocation2 [shape = 'u8[262144]{0}', space=vmem, size = 0x40000, scoped, tag = 'input window, operand 0']
    #allocation3 [shape = 's32[2]{0}', space=sflag, size = 0x8, scoped, tag = 'scoped memory for tpu_custom_call.1']
    #allocation4 [shape = 's32[2]{0}', space=sflag, size = 0x8, scoped, tag = 'scoped memory for tpu_custom_call.1']
    #allocation5 [shape = 'u8[2048]{0}', space=vmem, size = 0x800, scoped, tag = 'output window, operand 0']
    %6 = vsyncpa [#allocation3], 0
    %s7 = scalar_lea.sflag [#allocation3], 1
    %8 = vsyncpa %s7, 0
    %9 = vsyncpa [#allocation4], 0
    %s10 = scalar_lea.sflag [#allocation4], 1
    %11 = vsyncpa %s10, 0
    loop: start=0, step=1, limit=4
    $region2: #{tpu_custom_call.1} parent=1 // loop_pre_header
      _
    $region3: #{tpu_custom_call.1} parent=1 // loop_header
      %s13 = sphi 0, %s17
      %p14 = scmp.ge.s32.totalorder %s13, 4
      %s23 = sphi 0, %s25
      %s26 = sphi 0, %s23
      %s27 = sphi 0, %s26
      %s43 = sphi 0, %s27
      %s49 = sphi 0, %s51
      %s52 = sphi 0, %s49
      %s53 = sphi 0, %s52
      %s69 = sphi 0, %s53
    $region4: #{tpu_custom_call.1} parent=1 // loop_header_branch
      %16 = sbr.rel (%p14) target = $region8
    $region5: #{tpu_custom_call.1} parent=1 // loop_body
      %s18 = ssub.s32 %s13, 1
      %s19 = ssub.s32 %s13, 2
      %s20 = sadd.s32 %s13, 1
      %s21 = ssub.s32 %s13, %s20
      %p22 = scmp.eq.s32.totalorder %s21, 0
      %s24 = sadd.s32 %s23, 1
      %s25 = scalar_select %p22, %s23, %s24
      %p28 = pneg %p22
      %p29 = scmp.eq.s32.totalorder %s13, 1
      %p30 = por %p28, %p29
      %p31 = scmp.ne.s32.totalorder %s23, %s26
      %p32 = scmp.eq.s32.totalorder %s13, 0
      %p33 = por %p31, %p32
      %p34 = scmp.ne.s32.totalorder %s23, %s26
      %p35 = scmp.eq.s32.totalorder %s18, 1
      %p36 = por %p34, %p35
      %p37 = scmp.ne.s32.totalorder %s26, %s27
      %p38 = scmp.eq.s32.totalorder %s18, 0
      %p39 = por %p37, %p38
      %p40 = scmp.ne.s32.totalorder %s26, %s27
      %p41 = scmp.eq.s32.totalorder %s19, 1
      %p42 = por %p40, %p41
      %p44 = scmp.ne.s32.totalorder %s27, %s43
      %p45 = scmp.eq.s32.totalorder %s19, 0
      %p46 = por %p44, %p45
      %s47 = ssub.s32 %s13, %s20
      %p48 = scmp.eq.s32.totalorder %s47, 0
      %s50 = sadd.s32 %s49, 1
      %s51 = scalar_select %p48, %s49, %s50
      %p54 = pneg %p48
      %p55 = scmp.eq.s32.totalorder %s13, 1
      %p56 = por %p54, %p55
      %p57 = scmp.ne.s32.totalorder %s49, %s52
      %p58 = scmp.eq.s32.totalorder %s13, 0
      %p59 = por %p57, %p58
      %p60 = scmp.ne.s32.totalorder %s49, %s52
      %p61 = scmp.eq.s32.totalorder %s18, 1
      %p62 = por %p60, %p61
      %p63 = scmp.ne.s32.totalorder %s52, %s53
      %p64 = scmp.eq.s32.totalorder %s18, 0
      %p65 = por %p63, %p64
      %p66 = scmp.ne.s32.totalorder %s52, %s53
      %p67 = scmp.eq.s32.totalorder %s19, 1
      %p68 = por %p66, %p67
      %p70 = scmp.ne.s32.totalorder %s53, %s69
      %p71 = scmp.eq.s32.totalorder %s19, 0
      %p72 = por %p70, %p71
      %p73 = scmp.le.s32.totalorder 1, %s13
      %p74 = scmp.lt.s32.totalorder %s13, 3
      %p75 = pnand %p73, %p74
      %p76 = pneg %p75
      // Predicated region
      $region9: #{tpu_custom_call.1} parent=5 // pred_check
        _
      $region10: #{tpu_custom_call.1} parent=5 // pred_check_branch
        %78 = sbr.rel (%p75) target = $region12
      $region11: #{tpu_custom_call.1} parent=5 // pred_region
        %s79 = ssub.s32 %s13, 1
      $region12: #{tpu_custom_call.1} parent=5 // pred_fallthru
        _
      %p80 = scmp.lt.s32.totalorder %s13, 2
      // Predicated region
      $region13: #{tpu_custom_call.1} parent=5 // pred_check
        %p81 = pneg %p80
      $region14: #{tpu_custom_call.1} parent=5 // pred_check_branch
        %83 = sbr.rel (%p81) target = $region16
      $region15: #{tpu_custom_call.1} parent=5 // pred_region
        // Predicated region
        $region17: #{tpu_custom_call.1} parent=15 // pred_check
          %p84 = pneg %p33
        $region18: #{tpu_custom_call.1} parent=15 // pred_check_branch
          %86 = sbr.rel (%p84) target = $region20
        $region19: #{tpu_custom_call.1} parent=15 // pred_region
          %s87 = sand.u32 %s23, 1
          %s88 = scalar_lea.sflag [#allocation3], %s87
          %s89 = sand.u32 %s23, 1
          %s90 = smul.addr %s89, 256
          %s91 = scalar_lea.vmem [#allocation2], %s90
          %93 = vsyncadd %s88, 0
          %s94 = smul.addr %s13, 32
          %s95 = smul.addr %s94, 8
          %s96 = scalar_lea.hbm %s0, %s95
          %s97 = sshll.u32 %s96, 4
          %s98 = int_to_ptr.hbm [resolvable:$true] %s97
          %s99 = sshll.u32 %s91, 4
          %s100 = int_to_ptr.vmem [resolvable:$true] %s99
          %105 = dma.hbm_to_vmem [thread:$0]  %s98, 4096, %s100, %s88, 128, 128, 8
        $region20: #{tpu_custom_call.1} parent=15 // pred_fallthru
          _
      $region16: #{tpu_custom_call.1} parent=5 // pred_fallthru
        _
      %p106 = scmp.le.s32.totalorder 1, %s13
      %p107 = scmp.lt.s32.totalorder %s13, 3
      %p108 = pnand %p106, %p107
      %p109 = pneg %p108
      // Predicated region
      $region21: #{tpu_custom_call.1} parent=5 // pred_check
        _
      $region22: #{tpu_custom_call.1} parent=5 // pred_check_branch
        %111 = sbr.rel (%p108) target = $region24
      $region23: #{tpu_custom_call.1} parent=5 // pred_region
        %s112 = ssub.s32 %s13, 1
        %s113 = sand.u32 %s26, 1
        %s114 = scalar_lea.sflag [#allocation3], %s113
        %s115 = sand.u32 %s26, 1
        %s116 = smul.addr %s115, 256
        %s117 = scalar_lea.vmem [#allocation2], %s116
        // Predicated region
        $region25: #{tpu_custom_call.1} parent=23 // pred_check
          %p118 = pneg %p39
        $region26: #{tpu_custom_call.1} parent=23 // pred_check_branch
          %120 = sbr.rel (%p118) target = $region28
        $region27: #{tpu_custom_call.1} parent=23 // pred_region
          %122 = dma.done %s114, 4096
        $region28: #{tpu_custom_call.1} parent=23 // pred_fallthru
          _
        %s123 = sand.u32 %s26, 1
        %s124 = scalar_lea.sflag [#allocation3], %s123
        %s125 = sand.u32 %s26, 1
        %s126 = smul.addr %s125, 256
        %s127 = scalar_lea.vmem [#allocation2], %s126
        %p128 = pneg %p39
        %p129 = pneg %p36
        %p130 = pneg %p65
        %p131 = pneg %p62
        %s132 = sand.u32 %s52, 1
        %s133 = scalar_lea.sflag [#allocation4], %s132
        %s134 = sand.u32 %s52, 1
        %s135 = smul.addr %s134, 2
        %s136 = scalar_lea.vmem [#allocation5], %s135
        %v137 = vld [vmem:[%s117] sm:$0xff]
        %v138 = vld [vmem:[%s117 + $0x8] sm:$0xff]
        %v139 = vld [vmem:[%s117 + $0x10] sm:$0xff]
        %v140 = vld [vmem:[%s117 + $0x18] sm:$0xff]
        %v141 = vld [vmem:[%s117 + $0x20] sm:$0xff]
        %v142 = vld [vmem:[%s117 + $0x28] sm:$0xff]
        %v143 = vld [vmem:[%s117 + $0x30] sm:$0xff]
        %v144 = vld [vmem:[%s117 + $0x38] sm:$0xff]
        %v145 = vld [vmem:[%s117 + $0x40] sm:$0xff]
        %v146 = vld [vmem:[%s117 + $0x48] sm:$0xff]
        %v147 = vld [vmem:[%s117 + $0x50] sm:$0xff]
        %v148 = vld [vmem:[%s117 + $0x58] sm:$0xff]
        %v149 = vld [vmem:[%s117 + $0x60] sm:$0xff]
        %v150 = vld [vmem:[%s117 + $0x68] sm:$0xff]
        %v151 = vld [vmem:[%s117 + $0x70] sm:$0xff]
        %v152 = vld [vmem:[%s117 + $0x78] sm:$0xff]
        %v153 = vld [vmem:[%s117 + $0x80] sm:$0xff]
        %v154 = vld [vmem:[%s117 + $0x88] sm:$0xff]
        %v155 = vld [vmem:[%s117 + $0x90] sm:$0xff]
        %v156 = vld [vmem:[%s117 + $0x98] sm:$0xff]
        %v157 = vld [vmem:[%s117 + $0xa0] sm:$0xff]
        %v158 = vld [vmem:[%s117 + $0xa8] sm:$0xff]
        %v159 = vld [vmem:[%s117 + $0xb0] sm:$0xff]
        %v160 = vld [vmem:[%s117 + $0xb8] sm:$0xff]
        %v161 = vld [vmem:[%s117 + $0xc0] sm:$0xff]
        %v162 = vld [vmem:[%s117 + $0xc8] sm:$0xff]
        %v163 = vld [vmem:[%s117 + $0xd0] sm:$0xff]
        %v164 = vld [vmem:[%s117 + $0xd8] sm:$0xff]
        %v165 = vld [vmem:[%s117 + $0xe0] sm:$0xff]
        %v166 = vld [vmem:[%s117 + $0xe8] sm:$0xff]
        %v167 = vld [vmem:[%s117 + $0xf0] sm:$0xff]
        %v168 = vld [vmem:[%s117 + $0xf8] sm:$0xff]
        %v169 = vadd.f32 %v137, %v138
        %v170 = vadd.f32 %v169, %v139
        %v171 = vadd.f32 %v170, %v140
        %v172 = vadd.f32 %v171, %v141
        %v173 = vadd.f32 %v172, %v142
        %v174 = vadd.f32 %v173, %v143
        %v175 = vadd.f32 %v174, %v144
        %v176 = vadd.f32 %v175, %v145
        %v177 = vadd.f32 %v176, %v146
        %v178 = vadd.f32 %v177, %v147
        %v179 = vadd.f32 %v178, %v148
        %v180 = vadd.f32 %v179, %v149
        %v181 = vadd.f32 %v180, %v150
        %v182 = vadd.f32 %v181, %v151
        %v183 = vadd.f32 %v182, %v152
        %v184 = vadd.f32 %v183, %v153
        %v185 = vadd.f32 %v184, %v154
        %v186 = vadd.f32 %v185, %v155
        %v187 = vadd.f32 %v186, %v156
        %v188 = vadd.f32 %v187, %v157
        %v189 = vadd.f32 %v188, %v158
        %v190 = vadd.f32 %v189, %v159
        %v191 = vadd.f32 %v190, %v160
        %v192 = vadd.f32 %v191, %v161
        %v193 = vadd.f32 %v192, %v162
        %v194 = vadd.f32 %v193, %v163
        %v195 = vadd.f32 %v194, %v164
        %v196 = vadd.f32 %v195, %v165
        %v197 = vadd.f32 %v196, %v166
        %v198 = vadd.f32 %v197, %v167
        %v199 = vadd.f32 %v198, %v168
        %v200 = vrot.slane %v199, 4
        %v201 = vadd.f32 %v199, %v200
        %v202 = vrot.slane %v201, 2
        %v203 = vadd.f32 %v201, %v202
        %v204 = vrot.slane %v203, 1
        %v205 = vadd.f32 %v203, %v204
        %v206 = vrcp.pop 256.0
        %v207 = vmul.f32 256.0, %v206
        %v208 = vsub.f32 1.0, %v207
        %v209 = vmul.f32 %v206, %v208
        %v210 = vadd.f32 %v206, %v209
        %vm211 = vweird.f32 %v206
        %v212 = vsel %vm211, %v206, %v210
        %v213 = vmul.f32 %v205, %v212
        %v214 = vsub.f32 %v137, %v213
        %v215 = vsub.f32 %v138, %v213
        %v216 = vsub.f32 %v139, %v213
        %v217 = vsub.f32 %v140, %v213
        %v218 = vsub.f32 %v141, %v213
        %v219 = vsub.f32 %v142, %v213
        %v220 = vsub.f32 %v143, %v213
        %v221 = vsub.f32 %v144, %v213
        %v222 = vsub.f32 %v145, %v213
        %v223 = vsub.f32 %v146, %v213
        %v224 = vsub.f32 %v147, %v213
        %v225 = vsub.f32 %v148, %v213
        %v226 = vsub.f32 %v149, %v213
        %v227 = vsub.f32 %v150, %v213
        %v228 = vsub.f32 %v151, %v213
        %v229 = vsub.f32 %v152, %v213
        %v230 = vsub.f32 %v153, %v213
        %v231 = vsub.f32 %v154, %v213
        %v232 = vsub.f32 %v155, %v213
        %v233 = vsub.f32 %v156, %v213
        %v234 = vsub.f32 %v157, %v213
        %v235 = vsub.f32 %v158, %v213
        %v236 = vsub.f32 %v159, %v213
        %v237 = vsub.f32 %v160, %v213
        %v238 = vsub.f32 %v161, %v213
        %v239 = vsub.f32 %v162, %v213
        %v240 = vsub.f32 %v163, %v213
        %v241 = vsub.f32 %v164, %v213
        %v242 = vsub.f32 %v165, %v213
        %v243 = vsub.f32 %v166, %v213
        %v244 = vsub.f32 %v167, %v213
        %v245 = vsub.f32 %v168, %v213
        %v246 = vmul.f32 %v214, %v214
        %v247 = vmul.f32 %v215, %v215
        %v248 = vmul.f32 %v216, %v216
        %v249 = vmul.f32 %v217, %v217
        %v250 = vmul.f32 %v218, %v218
        %v251 = vmul.f32 %v219, %v219
        %v252 = vmul.f32 %v220, %v220
        %v253 = vmul.f32 %v221, %v221
        %v254 = vmul.f32 %v222, %v222
        %v255 = vmul.f32 %v223, %v223
        %v256 = vmul.f32 %v224, %v224
        %v257 = vmul.f32 %v225, %v225
        %v258 = vmul.f32 %v226, %v226
        %v259 = vmul.f32 %v227, %v227
        %v260 = vmul.f32 %v228, %v228
        %v261 = vmul.f32 %v229, %v229
        %v262 = vmul.f32 %v230, %v230
        %v263 = vmul.f32 %v231, %v231
        %v264 = vmul.f32 %v232, %v232
        %v265 = vmul.f32 %v233, %v233
        %v266 = vmul.f32 %v234, %v234
        %v267 = vmul.f32 %v235, %v235
        %v268 = vmul.f32 %v236, %v236
        %v269 = vmul.f32 %v237, %v237
        %v270 = vmul.f32 %v238, %v238
        %v271 = vmul.f32 %v239, %v239
        %v272 = vmul.f32 %v240, %v240
        %v273 = vmul.f32 %v241, %v241
        %v274 = vmul.f32 %v242, %v242
        %v275 = vmul.f32 %v243, %v243
        %v276 = vmul.f32 %v244, %v244
        %v277 = vmul.f32 %v245, %v245
        %v278 = vadd.f32 %v246, %v247
        %v279 = vadd.f32 %v278, %v248
        %v280 = vadd.f32 %v279, %v249
        %v281 = vadd.f32 %v280, %v250
        %v282 = vadd.f32 %v281, %v251
        %v283 = vadd.f32 %v282, %v252
        %v284 = vadd.f32 %v283, %v253
        %v285 = vadd.f32 %v284, %v254
        %v286 = vadd.f32 %v285, %v255
        %v287 = vadd.f32 %v286, %v256
        %v288 = vadd.f32 %v287, %v257
        %v289 = vadd.f32 %v288, %v258
        %v290 = vadd.f32 %v289, %v259
        %v291 = vadd.f32 %v290, %v260
        %v292 = vadd.f32 %v291, %v261
        %v293 = vadd.f32 %v292, %v262
        %v294 = vadd.f32 %v293, %v263
        %v295 = vadd.f32 %v294, %v264
        %v296 = vadd.f32 %v295, %v265
        %v297 = vadd.f32 %v296, %v266
        %v298 = vadd.f32 %v297, %v267
        %v299 = vadd.f32 %v298, %v268
        %v300 = vadd.f32 %v299, %v269
        %v301 = vadd.f32 %v300, %v270
        %v302 = vadd.f32 %v301, %v271
        %v303 = vadd.f32 %v302, %v272
        %v304 = vadd.f32 %v303, %v273
        %v305 = vadd.f32 %v304, %v274
        %v306 = vadd.f32 %v305, %v275
        %v307 = vadd.f32 %v306, %v276
        %v308 = vadd.f32 %v307, %v277
        %v309 = vrot.slane %v308, 4
        %v310 = vadd.f32 %v308, %v309
        %v311 = vrot.slane %v310, 2
        %v312 = vadd.f32 %v310, %v311
        %v313 = vrot.slane %v312, 1
        %v314 = vadd.f32 %v312, %v313
        %vm315 = vcmask 1040384
        %v316 = vsel %vm315, %v213, %v314
        %317 = vst [vmem:[%s136] sm:$0x3] %v316
        %s318 = sand.u32 %s52, 1
        %s319 = scalar_lea.sflag [#allocation4], %s318
        %s320 = sand.u32 %s52, 1
        %s321 = smul.addr %s320, 2
        %s322 = scalar_lea.vmem [#allocation5], %s321
        // Predicated region
        $region29: #{tpu_custom_call.1} parent=23 // pred_check
          %p323 = pneg %p62
        $region30: #{tpu_custom_call.1} parent=23 // pred_check_branch
          %325 = sbr.rel (%p323) target = $region32
        $region31: #{tpu_custom_call.1} parent=23 // pred_region
          %327 = vsyncadd %s319, 0
          %s328 = smul.addr %s18, 2
          %s329 = scalar_lea.hbm %s1, %s328
          %s331 = sshll.u32 %s322, 4
          %s332 = int_to_ptr.vmem [resolvable:$true] %s331
          %s333 = sshll.u32 %s329, 4
          %s334 = int_to_ptr.hbm [resolvable:$true] %s333
          %336 = dma.vmem_to_hbm [thread:$0]  %s332, 32, %s334, %s319
        $region32: #{tpu_custom_call.1} parent=23 // pred_fallthru
          _
      $region24: #{tpu_custom_call.1} parent=5 // pred_fallthru
        _
      %p337 = scmp.le.s32.totalorder 2, %s13
      // Predicated region
      $region33: #{tpu_custom_call.1} parent=5 // pred_check
        %p338 = pneg %p337
      $region34: #{tpu_custom_call.1} parent=5 // pred_check_branch
        %340 = sbr.rel (%p338) target = $region36
      $region35: #{tpu_custom_call.1} parent=5 // pred_region
        %s341 = ssub.s32 %s13, 2
        // Predicated region
        $region37: #{tpu_custom_call.1} parent=35 // pred_check
          %p342 = pneg %p68
        $region38: #{tpu_custom_call.1} parent=35 // pred_check_branch
          %344 = sbr.rel (%p342) target = $region40
        $region39: #{tpu_custom_call.1} parent=35 // pred_region
          %s345 = sand.u32 %s53, 1
          %s346 = scalar_lea.sflag [#allocation4], %s345
          %s347 = sand.u32 %s53, 1
          %s348 = smul.addr %s347, 2
          %s349 = scalar_lea.vmem [#allocation5], %s348
          %351 = dma.done %s346, 32
        $region40: #{tpu_custom_call.1} parent=35 // pred_fallthru
          _
      $region36: #{tpu_custom_call.1} parent=5 // pred_fallthru
        _
    $region6: #{tpu_custom_call.1} parent=1 // loop_footer
      %s17 = sadd.s32 1, %s13
    $region7: #{tpu_custom_call.1} parent=1 // loop_footer_branch
      %12 = sbr.rel target = $region3
    $region8: #{tpu_custom_call.1} parent=1 // loop_exit
      _
    %352 = vsyncpa [#allocation3], 1
    %s353 = scalar_lea.sflag [#allocation3], 1
    %354 = vsyncpa %s353, 1
    %355 = vsyncpa [#allocation4], 1
    %s356 = scalar_lea.sflag [#allocation4], 1
    %357 = vsyncpa %s356, 1

</llo_original>
